<compile_context>
chip_gen: v7x
topology: tpu7x:2x2x1
jax: 0.10.0
libtpu: 0.0.40
codegen_flags: <defaults>
</compile_context>

<pallas_src>
import jax
import jax.numpy as jnp
from jax import lax
from jax.experimental import pallas as pl
from jax.experimental.pallas import tpu as pltpu


def dnn_kernel(tok_ref, emb_ref, w1_ref, b1_ref, w2_ref, b2_ref, w3_ref, b3_ref,
               out_ref):
    # tok_ref: (B, S) int32 token ids
    # emb_ref: (Vp, Ep) f32 embedding table, already scaled by 1/S (mean fold)
    # w*_ref : (in_p, out_p) f32 padded, pre-transposed weights
    # b*_ref : (1, out_p) f32 padded bias rows
    # out_ref: (B, Cp) f32 lane-dense output slab
    tok = tok_ref[...]
    B, S = tok.shape
    Vp = emb_ref.shape[0]

    # Fused embedding lookup + mean:  x_mean = counts @ (embedding / S)
    # counts[b, v] = #{s : tok[b, s] == v}
    vocab_iota = lax.broadcasted_iota(jnp.int32, (B, S, Vp), 2)
    onehot = (tok[:, :, None] == vocab_iota).astype(jnp.float32)      # (B, S, Vp)
    counts = jnp.sum(onehot, axis=1)                                  # (B, Vp)
    x = jnp.dot(counts, emb_ref[...], preferred_element_type=jnp.float32)  # (B, Ep)

    # fc1 + ReLU   (dropout1 identity in eval)
    h1 = jnp.maximum(
        jnp.dot(x, w1_ref[...], preferred_element_type=jnp.float32) + b1_ref[...],
        0.0)
    # fc2 + ReLU   (dropout2 identity in eval)
    h2 = jnp.maximum(
        jnp.dot(h1, w2_ref[...], preferred_element_type=jnp.float32) + b2_ref[...],
        0.0)
    # final classifier (lane-dense padded store)
    out_ref[...] = (
        jnp.dot(h2, w3_ref[...], preferred_element_type=jnp.float32) + b3_ref[...])


def _round_up(x, m):
    return ((x + m - 1) // m) * m


def dnn_forward(tokens, embedding, w1, b1, w2, b2, w3, b3):
    """tokens: (B, S) int32; embedding: (V, E); w*: torch-style (out, in)."""
    B, S = tokens.shape
    V, E = embedding.shape
    H1, H2, C = w1.shape[0], w2.shape[0], w3.shape[0]

    # Pad every feature dim to 128 lanes (zero padding keeps results exact:
    # padded vocab rows are never hit, padded hidden units stay 0 through
    # bias=0 + ReLU and are multiplied by zero weight rows downstream).
    Vp, Ep = _round_up(V, 128), _round_up(E, 128)
    H1p, H2p, Cp = _round_up(H1, 128), _round_up(H2, 128), _round_up(C, 128)

    # Fold the 1/S of the mean into the embedding table (no in-kernel divide).
    emb_p = jnp.zeros((Vp, Ep), jnp.float32).at[:V, :E].set(embedding / S)
    w1_p = jnp.zeros((Ep, H1p), jnp.float32).at[:E, :H1].set(w1.T)
    b1_p = jnp.zeros((1, H1p), jnp.float32).at[0, :H1].set(b1)
    w2_p = jnp.zeros((H1p, H2p), jnp.float32).at[:H1, :H2].set(w2.T)
    b2_p = jnp.zeros((1, H2p), jnp.float32).at[0, :H2].set(b2)
    w3_p = jnp.zeros((H2p, Cp), jnp.float32).at[:H2, :C].set(w3.T)
    b3_p = jnp.zeros((1, Cp), jnp.float32).at[0, :C].set(b3)

    # Single step, everything VMEM-resident: no grid, no pipelining machinery.
    vmem_spec = pl.BlockSpec(memory_space=pltpu.MemorySpace.VMEM)
    out_padded = pl.pallas_call(
        dnn_kernel,
        out_shape=jax.ShapeDtypeStruct((B, Cp), jnp.float32),
        in_specs=[vmem_spec] * 8,
        out_specs=vmem_spec,
    )(tokens.astype(jnp.int32), emb_p, w1_p, b1_p, w2_p, b2_p, w3_p, b3_p)

    # TODO(synk): for large B on v7x, split B across a "parallel" grid axis so
    # both TensorCores are used; unnecessary at B=8.
    return out_padded[:, :C]


def reference_forward(tokens, embedding, w1, b1, w2, b2, w3, b3):
    x_embed = jnp.take(embedding, tokens, axis=0)
    x = jnp.mean(x_embed, axis=1)
    h1 = jnp.maximum(x @ w1.T + b1, 0.0)
    h2 = jnp.maximum(h1 @ w2.T + b2, 0.0)
    return h2 @ w3.T + b3


if __name__ == "__main__":
    # config
    vocab_size = 32
    embed_size = 32
    hidden_size_1 = 64
    hidden_size_2 = 32
    class_num = 8
    B, S = 8, 8

    key = jax.random.PRNGKey(0)
    keys = jax.random.split(key, 8)

    embedding = jax.random.normal(keys[0], (vocab_size, embed_size), jnp.float32) * 0.1
    w1 = jax.random.normal(keys[1], (hidden_size_1, embed_size), jnp.float32) * 0.1
    b1 = jax.random.normal(keys[2], (hidden_size_1,), jnp.float32) * 0.1
    w2 = jax.random.normal(keys[3], (hidden_size_2, hidden_size_1), jnp.float32) * 0.1
    b2 = jax.random.normal(keys[4], (hidden_size_2,), jnp.float32) * 0.1
    w3 = jax.random.normal(keys[5], (class_num, hidden_size_2), jnp.float32) * 0.1
    b3 = jax.random.normal(keys[6], (class_num,), jnp.float32) * 0.1

    tokens = jax.random.randint(keys[7], (B, S), 0, vocab_size, jnp.int32)

    dnn_forward_jit = jax.jit(dnn_forward)
    logits = dnn_forward_jit(tokens, embedding, w1, b1, w2, b2, w3, b3)
    jax.block_until_ready(logits)

    ref = reference_forward(tokens, embedding, w1, b1, w2, b2, w3, b3)
    assert logits.shape == (B, class_num)
    assert jnp.allclose(logits, ref, atol=1e-4, rtol=1e-4), "mismatch vs reference"

    print("KERNEL_OK")
</pallas_src>

<mosaic_0001>
module attributes {stable_mosaic.version = 11 : i64} {
  func.func @dnn_kernel(%arg0: memref<8x8xi32, #tpu.memory_space<vmem>>, %arg1: memref<128x128xf32, #tpu.memory_space<vmem>>, %arg2: memref<128x128xf32, #tpu.memory_space<vmem>>, %arg3: memref<1x128xf32, #tpu.memory_space<vmem>>, %arg4: memref<128x128xf32, #tpu.memory_space<vmem>>, %arg5: memref<1x128xf32, #tpu.memory_space<vmem>>, %arg6: memref<128x128xf32, #tpu.memory_space<vmem>>, %arg7: memref<1x128xf32, #tpu.memory_space<vmem>>, %arg8: memref<8x128xf32, #tpu.memory_space<vmem>>) attributes {dimension_semantics = [], scalar_prefetch = 0 : i64, scratch_operands = 0 : i64, tpu.core_type = #tpu.core_type<tc>} {
    %c0 = arith.constant 0 : index
    %c0_0 = arith.constant 0 : index
    %0 = vector.load %arg0[%c0, %c0_0] : memref<8x8xi32, #tpu.memory_space<vmem>>, vector<8x8xi32>
    %1 = tpu.iota {dimensions = array<i32: 2>} : vector<8x8x128xi32>
    %2 = vector.shape_cast %0 : vector<8x8xi32> to vector<8x8x1xi32>
    %3 = vector.broadcast %2 : vector<8x8x1xi32> to vector<8x8x128xi32>
    %4 = arith.cmpi eq, %3, %1 : vector<8x8x128xi32>
    %5 = arith.extui %4 : vector<8x8x128xi1> to vector<8x8x128xi32>
    %6 = arith.sitofp %5 : vector<8x8x128xi32> to vector<8x8x128xf32>
    %cst = arith.constant dense<0.000000e+00> : vector<8x128xf32>
    %7 = vector.multi_reduction <add>, %6, %cst [1] : vector<8x8x128xf32> to vector<8x128xf32>
    %c0_1 = arith.constant 0 : index
    %c0_2 = arith.constant 0 : index
    %8 = vector.load %arg1[%c0_1, %c0_2] : memref<128x128xf32, #tpu.memory_space<vmem>>, vector<128x128xf32>
    %cst_3 = arith.constant dense<0.000000e+00> : vector<8x128xf32>
    %9 = tpu.matmul %7, %8, %cst_3 {dimension_numbers = #tpu.dot_dimension_numbers<[1], [0], [0], [1], [0, 0, 1, 1], [], []>} : vector<8x128xf32>, vector<128x128xf32>, vector<8x128xf32> -> vector<8x128xf32>
    %c0_4 = arith.constant 0 : index
    %c0_5 = arith.constant 0 : index
    %10 = vector.load %arg2[%c0_4, %c0_5] : memref<128x128xf32, #tpu.memory_space<vmem>>, vector<128x128xf32>
    %cst_6 = arith.constant dense<0.000000e+00> : vector<8x128xf32>
    %11 = tpu.matmul %9, %10, %cst_6 {dimension_numbers = #tpu.dot_dimension_numbers<[1], [0], [0], [1], [0, 0, 1, 1], [], []>} : vector<8x128xf32>, vector<128x128xf32>, vector<8x128xf32> -> vector<8x128xf32>
    %c0_7 = arith.constant 0 : index
    %c0_8 = arith.constant 0 : index
    %12 = vector.load %arg3[%c0_7, %c0_8] : memref<1x128xf32, #tpu.memory_space<vmem>>, vector<1x128xf32>
    %13 = vector.broadcast %12 : vector<1x128xf32> to vector<8x128xf32>
    %14 = arith.addf %11, %13 : vector<8x128xf32>
    %cst_9 = arith.constant 0.000000e+00 : f32
    %15 = vector.broadcast %cst_9 : f32 to vector<8x128xf32>
    %16 = arith.maximumf %14, %15 : vector<8x128xf32>
    %c0_10 = arith.constant 0 : index
    %c0_11 = arith.constant 0 : index
    %17 = vector.load %arg4[%c0_10, %c0_11] : memref<128x128xf32, #tpu.memory_space<vmem>>, vector<128x128xf32>
    %cst_12 = arith.constant dense<0.000000e+00> : vector<8x128xf32>
    %18 = tpu.matmul %16, %17, %cst_12 {dimension_numbers = #tpu.dot_dimension_numbers<[1], [0], [0], [1], [0, 0, 1, 1], [], []>} : vector<8x128xf32>, vector<128x128xf32>, vector<8x128xf32> -> vector<8x128xf32>
    %c0_13 = arith.constant 0 : index
    %c0_14 = arith.constant 0 : index
    %19 = vector.load %arg5[%c0_13, %c0_14] : memref<1x128xf32, #tpu.memory_space<vmem>>, vector<1x128xf32>
    %20 = vector.broadcast %19 : vector<1x128xf32> to vector<8x128xf32>
    %21 = arith.addf %18, %20 : vector<8x128xf32>
    %cst_15 = arith.constant 0.000000e+00 : f32
    %22 = vector.broadcast %cst_15 : f32 to vector<8x128xf32>
    %23 = arith.maximumf %21, %22 : vector<8x128xf32>
    %c0_16 = arith.constant 0 : index
    %c0_17 = arith.constant 0 : index
    %24 = vector.load %arg6[%c0_16, %c0_17] : memref<128x128xf32, #tpu.memory_space<vmem>>, vector<128x128xf32>
    %cst_18 = arith.constant dense<0.000000e+00> : vector<8x128xf32>
    %25 = tpu.matmul %23, %24, %cst_18 {dimension_numbers = #tpu.dot_dimension_numbers<[1], [0], [0], [1], [0, 0, 1, 1], [], []>} : vector<8x128xf32>, vector<128x128xf32>, vector<8x128xf32> -> vector<8x128xf32>
    %c0_19 = arith.constant 0 : index
    %c0_20 = arith.constant 0 : index
    %26 = vector.load %arg7[%c0_19, %c0_20] : memref<1x128xf32, #tpu.memory_space<vmem>>, vector<1x128xf32>
    %27 = vector.broadcast %26 : vector<1x128xf32> to vector<8x128xf32>
    %28 = arith.addf %25, %27 : vector<8x128xf32>
    %c0_21 = arith.constant 0 : index
    %c0_22 = arith.constant 0 : index
    %29 = vector.load %arg8[%c0_21, %c0_22] : memref<8x128xf32, #tpu.memory_space<vmem>>, vector<8x128xf32>
    tpu.vector_store %arg8[%c0_21, %c0_22], %28 {strides = array<i32>} : memref<8x128xf32, #tpu.memory_space<vmem>>, vector<8x128xf32>,
    return
  }
}

</mosaic_0001>

<llo_original>
// kernel: dnn_forward.1
$region0: #{dnn_forward.1}
  #allocation0 [shape = 'u32[]', space=smem, size = 0x4, offset = 0x4, fixed_abs, tag = 'smem constant byte address 0x4 - core index']
  #allocation1 [shape = 'u32[144,128]{1,0:T(1,128)}', space=vmem, size = 0x12000, scoped, tag = 'internal scratch']
  %s0 = inlined_call_operand.vmem [shape: s32[8,8], index: 0, kind: input, shape index: {}]
  %s1 = inlined_call_operand.vmem [shape: f32[128,128], index: 1, kind: input, shape index: {}]
  %s2 = inlined_call_operand.vmem [shape: f32[128,128], index: 2, kind: input, shape index: {}]
  %s3 = inlined_call_operand.vmem [shape: f32[1,128], index: 3, kind: input, shape index: {}]
  %s4 = inlined_call_operand.vmem [shape: f32[128,128], index: 4, kind: input, shape index: {}]
  %s5 = inlined_call_operand.vmem [shape: f32[1,128], index: 5, kind: input, shape index: {}]
  %s6 = inlined_call_operand.vmem [shape: f32[128,128], index: 6, kind: input, shape index: {}]
  %s7 = inlined_call_operand.vmem [shape: f32[1,128], index: 7, kind: input, shape index: {}]
  %s8 = inlined_call_operand.hbm [shape: f32[8,128], index: 8, kind: output, shape index: {}]
  %s9 = sld [smem:[#allocation0]]
  $region42: #{dnn_forward.1} parent=0
    _
  %s11 = ssub.s32 1, %s9
  %s12 = scalar_select 0, %s11, %s9
  $region1: #{dnn_forward.1} parent=0
    #allocation2 [shape = 'u8[4096]{0}', space=vmem, size = 0x1000, scoped, tag = 'output window, operand 0, single buffered']
    #allocation3 [shape = 's32[1]{0}', space=sflag, size = 0x4, scoped, tag = 'scoped memory for dnn_forward.1']
    %13 = vsyncpa [#allocation3], 0
    // Predicated region
    $region2: #{dnn_forward.1} parent=1 // pred_check
      _
    $region3: #{dnn_forward.1} parent=1 // pred_check_branch
      %15 = sbr.rel (0) target = $region5
    $region4: #{dnn_forward.1} parent=1 // pred_region
      _
    $region5: #{dnn_forward.1} parent=1 // pred_fallthru
      _
    // Predicated region
    $region6: #{dnn_forward.1} parent=1 // pred_check
      _
    $region7: #{dnn_forward.1} parent=1 // pred_check_branch
      %17 = sbr.rel (0) target = $region9
    $region8: #{dnn_forward.1} parent=1 // pred_region
      _
    $region9: #{dnn_forward.1} parent=1 // pred_fallthru
      _
    // Predicated region
    $region10: #{dnn_forward.1} parent=1 // pred_check
      _
    $region11: #{dnn_forward.1} parent=1 // pred_check_branch
      %19 = sbr.rel (0) target = $region13
    $region12: #{dnn_forward.1} parent=1 // pred_region
      _
    $region13: #{dnn_forward.1} parent=1 // pred_fallthru
      _
    // Predicated region
    $region14: #{dnn_forward.1} parent=1 // pred_check
      _
    $region15: #{dnn_forward.1} parent=1 // pred_check_branch
      %21 = sbr.rel (0) target = $region17
    $region16: #{dnn_forward.1} parent=1 // pred_region
      _
    $region17: #{dnn_forward.1} parent=1 // pred_fallthru
      _
    // Predicated region
    $region18: #{dnn_forward.1} parent=1 // pred_check
      _
    $region19: #{dnn_forward.1} parent=1 // pred_check_branch
      %23 = sbr.rel (0) target = $region21
    $region20: #{dnn_forward.1} parent=1 // pred_region
      _
    $region21: #{dnn_forward.1} parent=1 // pred_fallthru
      _
    // Predicated region
    $region22: #{dnn_forward.1} parent=1 // pred_check
      _
    $region23: #{dnn_forward.1} parent=1 // pred_check_branch
      %25 = sbr.rel (0) target = $region25
    $region24: #{dnn_forward.1} parent=1 // pred_region
      _
    $region25: #{dnn_forward.1} parent=1 // pred_fallthru
      _
    // Predicated region
    $region26: #{dnn_forward.1} parent=1 // pred_check
      _
    $region27: #{dnn_forward.1} parent=1 // pred_check_branch
      %27 = sbr.rel (0) target = $region29
    $region28: #{dnn_forward.1} parent=1 // pred_region
      _
    $region29: #{dnn_forward.1} parent=1 // pred_fallthru
      _
    // Predicated region
    $region30: #{dnn_forward.1} parent=1 // pred_check
      _
    $region31: #{dnn_forward.1} parent=1 // pred_check_branch
      %29 = sbr.rel (0) target = $region33
    $region32: #{dnn_forward.1} parent=1 // pred_region
      _
    $region33: #{dnn_forward.1} parent=1 // pred_fallthru
      _
    %v30 = vld [vmem:[%s0] sm:$0xff]
    %v31 = vlaneseq
    %v32 = vand.u32 %v31, 127
    %v33 = vlaneseq
    %v34 = vshrl.u32 %v33, 7
    %v35 = vsub.s32 0, %v34
    %v36 = vrot.slane %v30, %v35
    %38 = vbcast.lane.b32.xlu0 %v36, 256
    %v39 = vpop.permute.xlu0 %38
    %v40 = vlaneseq
    %v41 = vshrl.u32 %v40, 7
    %v42 = vsub.s32 1, %v41
    %v43 = vrot.slane %v30, %v42
    %45 = vbcast.lane.b32.xlu0 %v43, 256
    %v46 = vpop.permute.xlu0 %45
    %v47 = vlaneseq
    %v48 = vshrl.u32 %v47, 7
    %v49 = vsub.s32 2, %v48
    %v50 = vrot.slane %v30, %v49
    %52 = vbcast.lane.b32.xlu0 %v50, 256
    %v53 = vpop.permute.xlu0 %52
    %v54 = vlaneseq
    %v55 = vshrl.u32 %v54, 7
    %v56 = vsub.s32 3, %v55
    %v57 = vrot.slane %v30, %v56
    %59 = vbcast.lane.b32.xlu0 %v57, 256
    %v60 = vpop.permute.xlu0 %59
    %v61 = vlaneseq
    %v62 = vshrl.u32 %v61, 7
    %v63 = vsub.s32 4, %v62
    %v64 = vrot.slane %v30, %v63
    %66 = vbcast.lane.b32.xlu0 %v64, 256
    %v67 = vpop.permute.xlu0 %66
    %v68 = vlaneseq
    %v69 = vshrl.u32 %v68, 7
    %v70 = vsub.s32 5, %v69
    %v71 = vrot.slane %v30, %v70
    %73 = vbcast.lane.b32.xlu0 %v71, 256
    %v74 = vpop.permute.xlu0 %73
    %v75 = vlaneseq
    %v76 = vshrl.u32 %v75, 7
    %v77 = vsub.s32 6, %v76
    %v78 = vrot.slane %v30, %v77
    %80 = vbcast.lane.b32.xlu0 %v78, 256
    %v81 = vpop.permute.xlu0 %80
    %v82 = vlaneseq
    %v83 = vshrl.u32 %v82, 7
    %v84 = vsub.s32 7, %v83
    %v85 = vrot.slane %v30, %v84
    %87 = vbcast.lane.b32.xlu0 %v85, 256
    %v88 = vpop.permute.xlu0 %87
    %vm89 = vcmp.eq.s32.totalorder %v39, %v32
    %vm90 = vcmp.eq.s32.totalorder %v46, %v32
    %vm91 = vcmp.eq.s32.totalorder %v53, %v32
    %vm92 = vcmp.eq.s32.totalorder %v60, %v32
    %vm93 = vcmp.eq.s32.totalorder %v67, %v32
    %vm94 = vcmp.eq.s32.totalorder %v74, %v32
    %vm95 = vcmp.eq.s32.totalorder %v81, %v32
    %vm96 = vcmp.eq.s32.totalorder %v88, %v32
    %v97 = vsel %vm89, 1, 0
    %v98 = vsel %vm90, 1, 0
    %v99 = vsel %vm91, 1, 0
    %v100 = vsel %vm92, 1, 0
    %v101 = vsel %vm93, 1, 0
    %v102 = vsel %vm94, 1, 0
    %v103 = vsel %vm95, 1, 0
    %v104 = vsel %vm96, 1, 0
    %v105 = vcvt.s32.f32 %v97
    %v106 = vcvt.s32.f32 %v98
    %v107 = vcvt.s32.f32 %v99
    %v108 = vcvt.s32.f32 %v100
    %v109 = vcvt.s32.f32 %v101
    %v110 = vcvt.s32.f32 %v102
    %v111 = vcvt.s32.f32 %v103
    %v112 = vcvt.s32.f32 %v104
    %v113 = vrot.slane %v105, 4
    %v114 = vadd.f32 %v105, %v113
    %v115 = vrot.slane %v114, 2
    %v116 = vadd.f32 %v114, %v115
    %v117 = vrot.slane %v116, 1
    %v118 = vadd.f32 %v116, %v117
    %v119 = vrot.slane %v106, 4
    %v120 = vadd.f32 %v106, %v119
    %v121 = vrot.slane %v120, 2
    %v122 = vadd.f32 %v120, %v121
    %v123 = vrot.slane %v122, 1
    %v124 = vadd.f32 %v122, %v123
    %v125 = vrot.slane %v107, 4
    %v126 = vadd.f32 %v107, %v125
    %v127 = vrot.slane %v126, 2
    %v128 = vadd.f32 %v126, %v127
    %v129 = vrot.slane %v128, 1
    %v130 = vadd.f32 %v128, %v129
    %v131 = vrot.slane %v108, 4
    %v132 = vadd.f32 %v108, %v131
    %v133 = vrot.slane %v132, 2
    %v134 = vadd.f32 %v132, %v133
    %v135 = vrot.slane %v134, 1
    %v136 = vadd.f32 %v134, %v135
    %v137 = vrot.slane %v109, 4
    %v138 = vadd.f32 %v109, %v137
    %v139 = vrot.slane %v138, 2
    %v140 = vadd.f32 %v138, %v139
    %v141 = vrot.slane %v140, 1
    %v142 = vadd.f32 %v140, %v141
    %v143 = vrot.slane %v110, 4
    %v144 = vadd.f32 %v110, %v143
    %v145 = vrot.slane %v144, 2
    %v146 = vadd.f32 %v144, %v145
    %v147 = vrot.slane %v146, 1
    %v148 = vadd.f32 %v146, %v147
    %v149 = vrot.slane %v111, 4
    %v150 = vadd.f32 %v111, %v149
    %v151 = vrot.slane %v150, 2
    %v152 = vadd.f32 %v150, %v151
    %v153 = vrot.slane %v152, 1
    %v154 = vadd.f32 %v152, %v153
    %v155 = vrot.slane %v112, 4
    %v156 = vadd.f32 %v112, %v155
    %v157 = vrot.slane %v156, 2
    %v158 = vadd.f32 %v156, %v157
    %v159 = vrot.slane %v158, 1
    %v160 = vadd.f32 %v158, %v159
    %v161 = vld [vmem:[%s1] sm:$0xff]
    %v162 = vld [vmem:[%s1 + $0x8] sm:$0xff]
    %v163 = vld [vmem:[%s1 + $0x10] sm:$0xff]
    %v164 = vld [vmem:[%s1 + $0x18] sm:$0xff]
    %v165 = vld [vmem:[%s1 + $0x20] sm:$0xff]
    %v166 = vld [vmem:[%s1 + $0x28] sm:$0xff]
    %v167 = vld [vmem:[%s1 + $0x30] sm:$0xff]
    %v168 = vld [vmem:[%s1 + $0x38] sm:$0xff]
    %v169 = vld [vmem:[%s1 + $0x40] sm:$0xff]
    %v170 = vld [vmem:[%s1 + $0x48] sm:$0xff]
    %v171 = vld [vmem:[%s1 + $0x50] sm:$0xff]
    %v172 = vld [vmem:[%s1 + $0x58] sm:$0xff]
    %v173 = vld [vmem:[%s1 + $0x60] sm:$0xff]
    %v174 = vld [vmem:[%s1 + $0x68] sm:$0xff]
    %v175 = vld [vmem:[%s1 + $0x70] sm:$0xff]
    %v176 = vld [vmem:[%s1 + $0x78] sm:$0xff]
    %vm185 = vcmask 1041409
    %v186 = vsel %vm185, %v124, %v118
    %vm187 = vcmask 1042434
    %v188 = vsel %vm187, %v130, %v186
    %vm189 = vcmask 1043459
    %v190 = vsel %vm189, %v136, %v188
    %vm191 = vcmask 1044484
    %v192 = vsel %vm191, %v142, %v190
    %vm193 = vcmask 1045509
    %v194 = vsel %vm193, %v148, %v192
    %vm195 = vcmask 1046534
    %v196 = vsel %vm195, %v154, %v194
    %vm197 = vcmask 1047559
    %v198 = vsel %vm197, %v160, %v196
    %200 = vmatprep.subr.mxu0 0.0
    %201 = vmatpush1.msra.mxu0 %v161
    %202 = vmatprep.subr.mxu0 0.0
    %203 = vmatpush1.msra.mxu0 %v162
    %204 = vmatprep.subr.mxu0 0.0
    %205 = vmatpush1.msra.mxu0 %v163
    %206 = vmatprep.subr.mxu0 0.0
    %207 = vmatpush1.msra.mxu0 %v164
    %208 = vmatprep.subr.mxu0 0.0
    %209 = vmatpush1.msra.mxu0 %v165
    %210 = vmatprep.subr.mxu0 0.0
    %211 = vmatpush1.msra.mxu0 %v166
    %212 = vmatprep.subr.mxu0 0.0
    %213 = vmatpush1.msra.mxu0 %v167
    %214 = vmatprep.subr.mxu0 0.0
    %215 = vmatpush1.msra.mxu0 %v168
    %216 = vmatprep.subr.mxu0 0.0
    %217 = vmatpush1.msra.mxu0 %v169
    %218 = vmatprep.subr.mxu0 0.0
    %219 = vmatpush1.msra.mxu0 %v170
    %220 = vmatprep.subr.mxu0 0.0
    %221 = vmatpush1.msra.mxu0 %v171
    %222 = vmatprep.subr.mxu0 0.0
    %223 = vmatpush1.msra.mxu0 %v172
    %224 = vmatprep.subr.mxu0 0.0
    %225 = vmatpush1.msra.mxu0 %v173
    %226 = vmatprep.subr.mxu0 0.0
    %227 = vmatpush1.msra.mxu0 %v174
    %228 = vmatprep.subr.mxu0 0.0
    %229 = vmatpush1.msra.mxu0 %v175
    %230 = vmatprep.subr.mxu0 0.0
    %231 = vmatpush1.msra.mxu0 %v176
    %232 = vmatprep.subr.mxu0 0.0
    %233 = vmatpush1.msra.mxu0 0.0
    %234 = vmatprep.subr.mxu0 0.0
    %235 = vmatpush1.msra.mxu0 0.0
    %236 = vmatprep.subr.mxu0 0.0
    %237 = vmatpush1.msra.mxu0 0.0
    %238 = vmatprep.subr.mxu0 0.0
    %239 = vmatpush1.msra.mxu0 0.0
    %240 = vmatprep.subr.mxu0 0.0
    %241 = vmatpush1.msra.mxu0 0.0
    %242 = vmatprep.subr.mxu0 0.0
    %243 = vmatpush1.msra.mxu0 0.0
    %244 = vmatprep.subr.mxu0 0.0
    %245 = vmatpush1.msra.mxu0 0.0
    %246 = vmatprep.subr.mxu0 0.0
    %247 = vmatpush1.msra.mxu0 0.0
    %248 = vmatprep.subr.mxu0 0.0
    %249 = vmatpush1.msra.mxu0 0.0
    %250 = vmatprep.subr.mxu0 0.0
    %251 = vmatpush1.msra.mxu0 0.0
    %252 = vmatprep.subr.mxu0 0.0
    %253 = vmatpush1.msra.mxu0 0.0
    %254 = vmatprep.subr.mxu0 0.0
    %255 = vmatpush1.msra.mxu0 0.0
    %256 = vmatprep.subr.mxu0 0.0
    %257 = vmatpush1.msra.mxu0 0.0
    %258 = vmatprep.subr.mxu0 0.0
    %259 = vmatpush1.msra.mxu0 0.0
    %260 = vmatprep.subr.mxu0 0.0
    %261 = vmatpush1.msra.mxu0 0.0
    %262 = vmatprep.subr.mxu0 0.0
    %263 = vmatpush1.msra.mxu0 0.0
    %264 = vmatprep.mubr.f32.mxu0 0.0
    %265 = vmatmul.mubr.f32.gmra.mrb[0].mxu0 %v198
    %v266 = vpop.f32.mrb[0].mxu0
    %v267 = vadd.f32 0.0, %v266
    %v268 = vpop.f32.mrb[0].mxu0
    %269 = vdwg.mxu0
    %v270 = vld [vmem:[%s2] sm:$0xff]
    %v271 = vld [vmem:[%s2 + $0x8] sm:$0xff]
    %v272 = vld [vmem:[%s2 + $0x10] sm:$0xff]
    %v273 = vld [vmem:[%s2 + $0x18] sm:$0xff]
    %v274 = vld [vmem:[%s2 + $0x20] sm:$0xff]
    %v275 = vld [vmem:[%s2 + $0x28] sm:$0xff]
    %v276 = vld [vmem:[%s2 + $0x30] sm:$0xff]
    %v277 = vld [vmem:[%s2 + $0x38] sm:$0xff]
    %v278 = vld [vmem:[%s2 + $0x40] sm:$0xff]
    %v279 = vld [vmem:[%s2 + $0x48] sm:$0xff]
    %v280 = vld [vmem:[%s2 + $0x50] sm:$0xff]
    %v281 = vld [vmem:[%s2 + $0x58] sm:$0xff]
    %v282 = vld [vmem:[%s2 + $0x60] sm:$0xff]
    %v283 = vld [vmem:[%s2 + $0x68] sm:$0xff]
    %v284 = vld [vmem:[%s2 + $0x70] sm:$0xff]
    %v285 = vld [vmem:[%s2 + $0x78] sm:$0xff]
    %v286 = vld [vmem:[%s3] sm:$0x1]
    %v288 = vlaneseq
    %v289 = vshrl.u32 %v288, 7
    %v290 = vsub.s32 0, %v289
    %v291 = vrot.slane %v286, %v290
    %293 = vmatprep.subr.mxu0 0.0
    %294 = vmatpush1.msra.mxu0 %v270
    %295 = vmatprep.subr.mxu0 0.0
    %296 = vmatpush1.msra.mxu0 %v271
    %297 = vmatprep.subr.mxu0 0.0
    %298 = vmatpush1.msra.mxu0 %v272
    %299 = vmatprep.subr.mxu0 0.0
    %300 = vmatpush1.msra.mxu0 %v273
    %301 = vmatprep.subr.mxu0 0.0
    %302 = vmatpush1.msra.mxu0 %v274
    %303 = vmatprep.subr.mxu0 0.0
    %304 = vmatpush1.msra.mxu0 %v275
    %305 = vmatprep.subr.mxu0 0.0
    %306 = vmatpush1.msra.mxu0 %v276
    %307 = vmatprep.subr.mxu0 0.0
    %308 = vmatpush1.msra.mxu0 %v277
    %309 = vmatprep.subr.mxu0 0.0
    %310 = vmatpush1.msra.mxu0 %v278
    %311 = vmatprep.subr.mxu0 0.0
    %312 = vmatpush1.msra.mxu0 %v279
    %313 = vmatprep.subr.mxu0 0.0
    %314 = vmatpush1.msra.mxu0 %v280
    %315 = vmatprep.subr.mxu0 0.0
    %316 = vmatpush1.msra.mxu0 %v281
    %317 = vmatprep.subr.mxu0 0.0
    %318 = vmatpush1.msra.mxu0 %v282
    %319 = vmatprep.subr.mxu0 0.0
    %320 = vmatpush1.msra.mxu0 %v283
    %321 = vmatprep.subr.mxu0 0.0
    %322 = vmatpush1.msra.mxu0 %v284
    %323 = vmatprep.subr.mxu0 0.0
    %324 = vmatpush1.msra.mxu0 %v285
    %325 = vmatprep.subr.mxu0 0.0
    %326 = vmatpush1.msra.mxu0 0.0
    %327 = vmatprep.subr.mxu0 0.0
    %328 = vmatpush1.msra.mxu0 0.0
    %329 = vmatprep.subr.mxu0 0.0
    %330 = vmatpush1.msra.mxu0 0.0
    %331 = vmatprep.subr.mxu0 0.0
    %332 = vmatpush1.msra.mxu0 0.0
    %333 = vmatprep.subr.mxu0 0.0
    %334 = vmatpush1.msra.mxu0 0.0
    %335 = vmatprep.subr.mxu0 0.0
    %336 = vmatpush1.msra.mxu0 0.0
    %337 = vmatprep.subr.mxu0 0.0
    %338 = vmatpush1.msra.mxu0 0.0
    %339 = vmatprep.subr.mxu0 0.0
    %340 = vmatpush1.msra.mxu0 0.0
    %341 = vmatprep.subr.mxu0 0.0
    %342 = vmatpush1.msra.mxu0 0.0
    %343 = vmatprep.subr.mxu0 0.0
    %344 = vmatpush1.msra.mxu0 0.0
    %345 = vmatprep.subr.mxu0 0.0
    %346 = vmatpush1.msra.mxu0 0.0
    %347 = vmatprep.subr.mxu0 0.0
    %348 = vmatpush1.msra.mxu0 0.0
    %349 = vmatprep.subr.mxu0 0.0
    %350 = vmatpush1.msra.mxu0 0.0
    %351 = vmatprep.subr.mxu0 0.0
    %352 = vmatpush1.msra.mxu0 0.0
    %353 = vmatprep.subr.mxu0 0.0
    %354 = vmatpush1.msra.mxu0 0.0
    %355 = vmatprep.subr.mxu0 0.0
    %356 = vmatpush1.msra.mxu0 0.0
    %357 = vmatprep.mubr.f32.mxu0 0.0
    %358 = vmatmul.mubr.f32.gmra.mrb[0].mxu0 %v267
    %v359 = vpop.f32.mrb[0].mxu0
    %v360 = vadd.f32 %v291, %v359
    %v361 = vpop.f32.mrb[0].mxu0
    %362 = vdwg.mxu0
    %v363 = vmax.f32 %v360, 0.0
    %v364 = vld [vmem:[%s4] sm:$0xff]
    %v365 = vld [vmem:[%s4 + $0x8] sm:$0xff]
    %v366 = vld [vmem:[%s4 + $0x10] sm:$0xff]
    %v367 = vld [vmem:[%s4 + $0x18] sm:$0xff]
    %v368 = vld [vmem:[%s4 + $0x20] sm:$0xff]
    %v369 = vld [vmem:[%s4 + $0x28] sm:$0xff]
    %v370 = vld [vmem:[%s4 + $0x30] sm:$0xff]
    %v371 = vld [vmem:[%s4 + $0x38] sm:$0xff]
    %v372 = vld [vmem:[%s4 + $0x40] sm:$0xff]
    %v373 = vld [vmem:[%s4 + $0x48] sm:$0xff]
    %v374 = vld [vmem:[%s4 + $0x50] sm:$0xff]
    %v375 = vld [vmem:[%s4 + $0x58] sm:$0xff]
    %v376 = vld [vmem:[%s4 + $0x60] sm:$0xff]
    %v377 = vld [vmem:[%s4 + $0x68] sm:$0xff]
    %v378 = vld [vmem:[%s4 + $0x70] sm:$0xff]
    %v379 = vld [vmem:[%s4 + $0x78] sm:$0xff]
    %v380 = vld [vmem:[%s5] sm:$0x1]
    %v382 = vlaneseq
    %v383 = vshrl.u32 %v382, 7
    %v384 = vsub.s32 0, %v383
    %v385 = vrot.slane %v380, %v384
    %387 = vmatprep.subr.mxu0 0.0
    %388 = vmatpush1.msra.mxu0 %v364
    %389 = vmatprep.subr.mxu0 0.0
    %390 = vmatpush1.msra.mxu0 %v365
    %391 = vmatprep.subr.mxu0 0.0
    %392 = vmatpush1.msra.mxu0 %v366
    %393 = vmatprep.subr.mxu0 0.0
    %394 = vmatpush1.msra.mxu0 %v367
    %395 = vmatprep.subr.mxu0 0.0
    %396 = vmatpush1.msra.mxu0 %v368
    %397 = vmatprep.subr.mxu0 0.0
    %398 = vmatpush1.msra.mxu0 %v369
    %399 = vmatprep.subr.mxu0 0.0
    %400 = vmatpush1.msra.mxu0 %v370
    %401 = vmatprep.subr.mxu0 0.0
    %402 = vmatpush1.msra.mxu0 %v371
    %403 = vmatprep.subr.mxu0 0.0
    %404 = vmatpush1.msra.mxu0 %v372
    %405 = vmatprep.subr.mxu0 0.0
    %406 = vmatpush1.msra.mxu0 %v373
    %407 = vmatprep.subr.mxu0 0.0
    %408 = vmatpush1.msra.mxu0 %v374
    %409 = vmatprep.subr.mxu0 0.0
    %410 = vmatpush1.msra.mxu0 %v375
    %411 = vmatprep.subr.mxu0 0.0
    %412 = vmatpush1.msra.mxu0 %v376
    %413 = vmatprep.subr.mxu0 0.0
    %414 = vmatpush1.msra.mxu0 %v377
    %415 = vmatprep.subr.mxu0 0.0
    %416 = vmatpush1.msra.mxu0 %v378
    %417 = vmatprep.subr.mxu0 0.0
    %418 = vmatpush1.msra.mxu0 %v379
    %419 = vmatprep.subr.mxu0 0.0
    %420 = vmatpush1.msra.mxu0 0.0
    %421 = vmatprep.subr.mxu0 0.0
    %422 = vmatpush1.msra.mxu0 0.0
    %423 = vmatprep.subr.mxu0 0.0
    %424 = vmatpush1.msra.mxu0 0.0
    %425 = vmatprep.subr.mxu0 0.0
    %426 = vmatpush1.msra.mxu0 0.0
    %427 = vmatprep.subr.mxu0 0.0
    %428 = vmatpush1.msra.mxu0 0.0
    %429 = vmatprep.subr.mxu0 0.0
    %430 = vmatpush1.msra.mxu0 0.0
    %431 = vmatprep.subr.mxu0 0.0
    %432 = vmatpush1.msra.mxu0 0.0
    %433 = vmatprep.subr.mxu0 0.0
    %434 = vmatpush1.msra.mxu0 0.0
    %435 = vmatprep.subr.mxu0 0.0
    %436 = vmatpush1.msra.mxu0 0.0
    %437 = vmatprep.subr.mxu0 0.0
    %438 = vmatpush1.msra.mxu0 0.0
    %439 = vmatprep.subr.mxu0 0.0
    %440 = vmatpush1.msra.mxu0 0.0
    %441 = vmatprep.subr.mxu0 0.0
    %442 = vmatpush1.msra.mxu0 0.0
    %443 = vmatprep.subr.mxu0 0.0
    %444 = vmatpush1.msra.mxu0 0.0
    %445 = vmatprep.subr.mxu0 0.0
    %446 = vmatpush1.msra.mxu0 0.0
    %447 = vmatprep.subr.mxu0 0.0
    %448 = vmatpush1.msra.mxu0 0.0
    %449 = vmatprep.subr.mxu0 0.0
    %450 = vmatpush1.msra.mxu0 0.0
    %451 = vmatprep.mubr.f32.mxu0 0.0
    %452 = vmatmul.mubr.f32.gmra.mrb[0].mxu0 %v363
    %v453 = vpop.f32.mrb[0].mxu0
    %v454 = vadd.f32 %v385, %v453
    %v455 = vpop.f32.mrb[0].mxu0
    %456 = vdwg.mxu0
    %v457 = vmax.f32 %v454, 0.0
    %v458 = vld [vmem:[%s6] sm:$0xff]
    %v459 = vld [vmem:[%s6 + $0x8] sm:$0xff]
    %v460 = vld [vmem:[%s6 + $0x10] sm:$0xff]
    %v461 = vld [vmem:[%s6 + $0x18] sm:$0xff]
    %v462 = vld [vmem:[%s6 + $0x20] sm:$0xff]
    %v463 = vld [vmem:[%s6 + $0x28] sm:$0xff]
    %v464 = vld [vmem:[%s6 + $0x30] sm:$0xff]
    %v465 = vld [vmem:[%s6 + $0x38] sm:$0xff]
    %v466 = vld [vmem:[%s6 + $0x40] sm:$0xff]
    %v467 = vld [vmem:[%s6 + $0x48] sm:$0xff]
    %v468 = vld [vmem:[%s6 + $0x50] sm:$0xff]
    %v469 = vld [vmem:[%s6 + $0x58] sm:$0xff]
    %v470 = vld [vmem:[%s6 + $0x60] sm:$0xff]
    %v471 = vld [vmem:[%s6 + $0x68] sm:$0xff]
    %v472 = vld [vmem:[%s6 + $0x70] sm:$0xff]
    %v473 = vld [vmem:[%s6 + $0x78] sm:$0xff]
    %v474 = vld [vmem:[%s7] sm:$0x1]
    %v476 = vlaneseq
    %v477 = vshrl.u32 %v476, 7
    %v478 = vsub.s32 0, %v477
    %v479 = vrot.slane %v474, %v478
    %481 = vmatprep.subr.mxu0 0.0
    %482 = vmatpush1.msra.mxu0 %v458
    %483 = vmatprep.subr.mxu0 0.0
    %484 = vmatpush1.msra.mxu0 %v459
    %485 = vmatprep.subr.mxu0 0.0
    %486 = vmatpush1.msra.mxu0 %v460
    %487 = vmatprep.subr.mxu0 0.0
    %488 = vmatpush1.msra.mxu0 %v461
    %489 = vmatprep.subr.mxu0 0.0
    %490 = vmatpush1.msra.mxu0 %v462
    %491 = vmatprep.subr.mxu0 0.0
    %492 = vmatpush1.msra.mxu0 %v463
    %493 = vmatprep.subr.mxu0 0.0
    %494 = vmatpush1.msra.mxu0 %v464
    %495 = vmatprep.subr.mxu0 0.0
    %496 = vmatpush1.msra.mxu0 %v465
    %497 = vmatprep.subr.mxu0 0.0
    %498 = vmatpush1.msra.mxu0 %v466
    %499 = vmatprep.subr.mxu0 0.0
    %500 = vmatpush1.msra.mxu0 %v467
    %501 = vmatprep.subr.mxu0 0.0
    %502 = vmatpush1.msra.mxu0 %v468
    %503 = vmatprep.subr.mxu0 0.0
    %504 = vmatpush1.msra.mxu0 %v469
    %505 = vmatprep.subr.mxu0 0.0
    %506 = vmatpush1.msra.mxu0 %v470
    %507 = vmatprep.subr.mxu0 0.0
    %508 = vmatpush1.msra.mxu0 %v471
    %509 = vmatprep.subr.mxu0 0.0
    %510 = vmatpush1.msra.mxu0 %v472
    %511 = vmatprep.subr.mxu0 0.0
    %512 = vmatpush1.msra.mxu0 %v473
    %513 = vmatprep.subr.mxu0 0.0
    %514 = vmatpush1.msra.mxu0 0.0
    %515 = vmatprep.subr.mxu0 0.0
    %516 = vmatpush1.msra.mxu0 0.0
    %517 = vmatprep.subr.mxu0 0.0
    %518 = vmatpush1.msra.mxu0 0.0
    %519 = vmatprep.subr.mxu0 0.0
    %520 = vmatpush1.msra.mxu0 0.0
    %521 = vmatprep.subr.mxu0 0.0
    %522 = vmatpush1.msra.mxu0 0.0
    %523 = vmatprep.subr.mxu0 0.0
    %524 = vmatpush1.msra.mxu0 0.0
    %525 = vmatprep.subr.mxu0 0.0
    %526 = vmatpush1.msra.mxu0 0.0
    %527 = vmatprep.subr.mxu0 0.0
    %528 = vmatpush1.msra.mxu0 0.0
    %529 = vmatprep.subr.mxu0 0.0
    %530 = vmatpush1.msra.mxu0 0.0
    %531 = vmatprep.subr.mxu0 0.0
    %532 = vmatpush1.msra.mxu0 0.0
    %533 = vmatprep.subr.mxu0 0.0
    %534 = vmatpush1.msra.mxu0 0.0
    %535 = vmatprep.subr.mxu0 0.0
    %536 = vmatpush1.msra.mxu0 0.0
    %537 = vmatprep.subr.mxu0 0.0
    %538 = vmatpush1.msra.mxu0 0.0
    %539 = vmatprep.subr.mxu0 0.0
    %540 = vmatpush1.msra.mxu0 0.0
    %541 = vmatprep.subr.mxu0 0.0
    %542 = vmatpush1.msra.mxu0 0.0
    %543 = vmatprep.subr.mxu0 0.0
    %544 = vmatpush1.msra.mxu0 0.0
    %545 = vmatprep.mubr.f32.mxu0 0.0
    %546 = vmatmul.mubr.f32.gmra.mrb[0].mxu0 %v457
    %v547 = vpop.f32.mrb[0].mxu0
    %v548 = vadd.f32 %v479, %v547
    %v549 = vpop.f32.mrb[0].mxu0
    %550 = vdwg.mxu0
    %551 = vst [vmem:[#allocation2] sm:$0xff] %v548
    // Predicated region
    $region34: #{dnn_forward.1} parent=1 // pred_check
      _
    $region35: #{dnn_forward.1} parent=1 // pred_check_branch
      %553 = sbr.rel (0) target = $region37
    $region36: #{dnn_forward.1} parent=1 // pred_region
      %s555 = ssub.s32 128, 128
      %556 = vsyncadd [#allocation3], %s555
      %s558 = sshll.u32 [#allocation2], 4
      %s559 = int_to_ptr.vmem [resolvable:$true] %s558
      %561 = dma.vmem_to_hbm [thread:$0]  %s559, 128, %s8, [#allocation3]
    $region37: #{dnn_forward.1} parent=1 // pred_fallthru
      _
    // Predicated region
    $region38: #{dnn_forward.1} parent=1 // pred_check
      _
    $region39: #{dnn_forward.1} parent=1 // pred_check_branch
      %563 = sbr.rel (0) target = $region41
    $region40: #{dnn_forward.1} parent=1 // pred_region
      %564 = dma.done [#allocation3], 128
    $region41: #{dnn_forward.1} parent=1 // pred_fallthru
      _
    %565 = vsyncpa [#allocation3], 1

</llo_original>
